<compile_context>
chip_gen: v7x
topology: tpu7x:2x2x1
jax: 0.10.0
libtpu: 0.0.40
codegen_flags: <defaults>
</compile_context>

<pallas_src>
import functools

import jax
import jax.numpy as jnp
from jax import lax
from jax.experimental import pallas as pl
from jax.experimental.pallas import tpu as pltpu


# ------------------------------- helpers ---------------------------------- #

def _round_up(x, m):
    return (x + m - 1) // m * m


def _erf_approx(x):
    # Abramowitz & Stegun 7.1.26, |error| <= 1.5e-7.  Uses only mul/add/div/exp/where
    # so it is guaranteed to lower on the TPU VPU/EUP (avoids relying on an erf
    # lowering inside Mosaic).
    a1, a2, a3, a4, a5 = 0.254829592, -0.284496736, 1.421413741, -1.453152027, 1.061405429
    p = 0.3275911
    ax = jnp.abs(x)
    t = 1.0 / (1.0 + p * ax)
    poly = ((((a5 * t + a4) * t + a3) * t + a2) * t + a1) * t
    y = 1.0 - poly * jnp.exp(-ax * ax)
    return jnp.where(x >= 0, y, -y)


def _gelu_exact(x):
    # PyTorch nn.GELU() default (exact, erf-based) to within ~1.5e-7.
    return 0.5 * x * (1.0 + _erf_approx(x * 0.7071067811865476))


# --------------------------- depthwise conv1d ------------------------------ #

def _dwconv_kernel(xp_ref, w_ref, b_ref, o_ref, *, K):
    # xp_ref: (tile_c, T + K - 1) zero-padded input; w_ref: (tile_c, K); b_ref: (tile_c, 1)
    T = o_ref.shape[-1]
    x = xp_ref[...].astype(jnp.float32)
    w = w_ref[...].astype(jnp.float32)
    acc = w[:, 0:1] * x[:, 0:T]
    for k in range(1, K):                          # K is small and static: unrolled
        acc = acc + w[:, k:k + 1] * x[:, k:k + T]
    acc = acc + b_ref[...].astype(jnp.float32)     # (tile_c, 1) broadcasts over T
    o_ref[...] = acc.astype(o_ref.dtype)


def _pick_tile_c(C, T_pad, target_bytes=2 << 20):
    """Multiple-of-8 divisor of C whose (tile_c, T_pad) f32 slab stays near ~2 MiB."""
    if C % 8 != 0 or C * T_pad * 4 <= target_bytes:
        return C
    tile = 8
    cand = 16
    while cand <= C:
        if C % cand == 0 and cand * T_pad * 4 <= target_bytes:
            tile = cand
        cand += 8
    return tile


def depthwise_conv1d(x, w, b, *, mode="noncausal"):
    """x: (B, C, T); w: (C, K) depthwise taps; b: (C,).  Cross-correlation (torch Conv1d)."""
    B, C, T = x.shape
    K = w.shape[-1]
    if mode == "noncausal":
        pad = (K - 1) // 2
        xp = jnp.pad(x, ((0, 0), (0, 0), (pad, K - 1 - pad)))
    elif mode == "causal":
        xp = jnp.pad(x, ((0, 0), (0, 0), (K - 1, 0)))
    else:
        raise NotImplementedError(f"Mode ({mode}) is not supported!")
    T_pad = T + K - 1
    tile_c = _pick_tile_c(C, T_pad)
    grid = (B, pl.cdiv(C, tile_c))

    return pl.pallas_call(
        functools.partial(_dwconv_kernel, K=K),
        out_shape=jax.ShapeDtypeStruct((B, C, T), x.dtype),
        grid_spec=pltpu.PrefetchScalarGridSpec(
            num_scalar_prefetch=0,
            grid=grid,
            in_specs=[
                pl.BlockSpec((pl.Squeezed(), tile_c, T_pad), lambda bb, ci: (bb, ci, 0)),
                pl.BlockSpec((tile_c, K), lambda bb, ci: (ci, 0)),
                pl.BlockSpec((tile_c, 1), lambda bb, ci: (ci, 0)),
            ],
            out_specs=pl.BlockSpec((pl.Squeezed(), tile_c, T), lambda bb, ci: (bb, ci, 0)),
        ),
        compiler_params=pltpu.CompilerParams(
            dimension_semantics=("parallel", "parallel")),
    )(xp, w.reshape(C, K), b.reshape(C, 1))


# ------------- fused LayerNorm + MLP + layer-scale + residual --------------- #

def _tail_kernel(*refs, eps, add_residual):
    if add_residual:
        (h_ref, r_ref, lnw_ref, lnb_ref, w1_ref, b1_ref,
         w2_ref, b2_ref, g_ref, o_ref) = refs
    else:
        (h_ref, lnw_ref, lnb_ref, w1_ref, b1_ref,
         w2_ref, b2_ref, g_ref, o_ref) = refs
        r_ref = None

    x = h_ref[...].astype(jnp.float32)                         # (rows, C)
    # Single-pass stats: mean and E[x^2]  ->  biased variance (matches F.layer_norm).
    mean = jnp.mean(x, axis=-1, keepdims=True)
    mean_sq = jnp.mean(x * x, axis=-1, keepdims=True)
    var = jnp.maximum(mean_sq - mean * mean, 0.0)
    y = (x - mean) * lax.rsqrt(var + eps)
    y = y * lnw_ref[...].astype(jnp.float32) + lnb_ref[...].astype(jnp.float32)

    h = jnp.dot(y, w1_ref[...].astype(jnp.float32),
                preferred_element_type=jnp.float32) + b1_ref[...].astype(jnp.float32)
    h = _gelu_exact(h)
    z = jnp.dot(h, w2_ref[...].astype(jnp.float32),
                preferred_element_type=jnp.float32) + b2_ref[...].astype(jnp.float32)
    z = z * g_ref[...].astype(jnp.float32)
    if add_residual:
        z = z + r_ref[...].astype(jnp.float32)
    o_ref[...] = z.astype(o_ref.dtype)


def _pick_block_rows(N, C, H, target_bytes=2 << 20):
    per_row = 4 * (3 * C + H)            # h + residual + out (C each) + hidden (H), f32
    rows = max(8, min(2048, target_bytes // per_row))
    # keep >= 2 grid steps when possible (pipeline overlap / v7x megacore sharding)
    rows = min(rows, max(8, _round_up(pl.cdiv(N, 2), 8)))
    return _round_up(rows, 8)


def fused_norm_mlp(h_rows, res_rows, ln_w, ln_b, w1, b1, w2, b2, gamma, *,
                   eps=1e-6, apply_residual=True):
    """h_rows/res_rows: (N, C) with N = B*T.  Returns (N, C)."""
    N, C = h_rows.shape
    H = w1.shape[-1]

    block_rows = _pick_block_rows(N, C, H)
    Np = _round_up(N, block_rows)
    if Np != N:                                   # cdiv-style robustness: zero-pad rows
        h_rows = jnp.pad(h_rows, ((0, Np - N), (0, 0)))
        if apply_residual:
            res_rows = jnp.pad(res_rows, ((0, Np - N), (0, 0)))
    grid = (Np // block_rows,)

    row_spec = pl.BlockSpec((block_rows, C), lambda i: (i, 0))
    vec_c = pl.BlockSpec((1, C), lambda i: (0, 0))
    vec_h = pl.BlockSpec((1, H), lambda i: (0, 0))
    w1_spec = pl.BlockSpec((C, H), lambda i: (0, 0))
    w2_spec = pl.BlockSpec((H, C), lambda i: (0, 0))

    in_specs = [row_spec]
    args = [h_rows]
    if apply_residual:
        in_specs.append(row_spec)
        args.append(res_rows)
    in_specs += [vec_c, vec_c, w1_spec, vec_h, w2_spec, vec_c, vec_c]
    args += [ln_w.reshape(1, C), ln_b.reshape(1, C), w1, b1.reshape(1, H),
             w2, b2.reshape(1, C), gamma.reshape(1, C)]

    # VMEM budget (f32): grid-invariant weights + double-buffered row blocks +
    # hidden activation.  Clamped to [32 MiB, 64 MiB] (v7x physical is 64 MiB).
    weight_bytes = 4 * (2 * C * H + 2 * H + 6 * C)
    block_bytes = 4 * block_rows * (3 * C + H)
    vmem_limit = int(1.5 * (2 * weight_bytes + 3 * block_bytes))
    vmem_limit = min(64 * 1024 * 1024, max(32 * 1024 * 1024, vmem_limit))

    out = pl.pallas_call(
        functools.partial(_tail_kernel, eps=eps, add_residual=apply_residual),
        out_shape=jax.ShapeDtypeStruct((Np, C), h_rows.dtype),
        grid_spec=pltpu.PrefetchScalarGridSpec(
            num_scalar_prefetch=0,
            grid=grid,
            in_specs=in_specs,
            out_specs=row_spec,
        ),
        compiler_params=pltpu.CompilerParams(
            dimension_semantics=("parallel",),
            vmem_limit_bytes=vmem_limit),
    )(*args)
    return out[:N]


# ----------------------------- EncoderBlock -------------------------------- #

def encoder_block_forward(x, params, *, mode="noncausal", eps=1e-6,
                          apply_residual=True):
    """x: (B, C, T).  params: dw_w (C,K), dw_b (C,), ln_w/ln_b (C,),
    w1 (C,H), b1 (H,), w2 (H,C), b2 (C,), gamma (C,) or None."""
    B, C, T = x.shape
    h = depthwise_conv1d(x, params["dw_w"], params["dw_b"], mode=mode)
    # permute(0, 2, 1): rows = B*T on sublanes, C on lanes (MXU-friendly contraction dim).
    h_rows = jnp.transpose(h, (0, 2, 1)).reshape(B * T, C)
    res_rows = (jnp.transpose(x, (0, 2, 1)).reshape(B * T, C)
                if apply_residual else None)
    gamma = params["gamma"]
    if gamma is None:
        gamma = jnp.ones((C,), x.dtype)
    out_rows = fused_norm_mlp(h_rows, res_rows, params["ln_w"], params["ln_b"],
                              params["w1"], params["b1"], params["w2"], params["b2"],
                              gamma, eps=eps, apply_residual=apply_residual)
    # TODO(synk): DropPath (stochastic depth) is training-only randomness; it is the
    # identity here (module default drop_path=0.0 builds nn.Identity / eval mode).
    return jnp.transpose(out_rows.reshape(B, T, C), (0, 2, 1))


# --------------------------------- main ------------------------------------ #

if __name__ == "__main__":
    key = jax.random.PRNGKey(0)
    B, C, T = 2, 32, 16
    K = 7
    H = 4 * C            # mlp_ratio = 4.0
    eps = 1e-6

    ks = jax.random.split(key, 10)
    x = jax.random.normal(ks[0], (B, C, T), jnp.float32)
    params = dict(
        dw_w=0.3 * jax.random.normal(ks[1], (C, K), jnp.float32),
        dw_b=0.1 * jax.random.normal(ks[2], (C,), jnp.float32),
        ln_w=1.0 + 0.1 * jax.random.normal(ks[3], (C,), jnp.float32),
        ln_b=0.05 * jax.random.normal(ks[4], (C,), jnp.float32),
        w1=0.2 * jax.random.normal(ks[5], (C, H), jnp.float32),
        b1=0.05 * jax.random.normal(ks[6], (H,), jnp.float32),
        w2=0.2 * jax.random.normal(ks[7], (H, C), jnp.float32),
        b2=0.05 * jax.random.normal(ks[8], (C,), jnp.float32),
        # module init is layer_scale_init_value * ones(dim); use O(1) values so the
        # layer-scale path is actually exercised by the numeric check.
        gamma=1.0 + 0.1 * jax.random.normal(ks[9], (C,), jnp.float32),
    )

    out = jax.block_until_ready(
        encoder_block_forward(x, params, mode="noncausal", eps=eps))

    # Pure-JAX reference (same math as the PyTorch module).
    def ref_forward(xin):
        pad = (K - 1) // 2
        xp = jnp.pad(xin, ((0, 0), (0, 0), (pad, pad)))
        h = sum(params["dw_w"][None, :, k:k + 1] * xp[:, :, k:k + T] for k in range(K))
        h = h + params["dw_b"][None, :, None]
        ht = jnp.transpose(h, (0, 2, 1))
        u = ht.mean(-1, keepdims=True)
        s = ((ht - u) ** 2).mean(-1, keepdims=True)
        y = (ht - u) / jnp.sqrt(s + eps) * params["ln_w"] + params["ln_b"]
        z = jax.nn.gelu(y @ params["w1"] + params["b1"], approximate=False)
        z = z @ params["w2"] + params["b2"]
        z = params["gamma"] * z
        return xin + jnp.transpose(z, (0, 2, 1))

    ref = ref_forward(x)
    assert out.shape == x.shape
    assert jnp.allclose(out, ref, atol=1e-4, rtol=1e-4), \
        float(jnp.max(jnp.abs(out - ref)))

    # also exercise apply_residual=False
    out_nr = jax.block_until_ready(
        encoder_block_forward(x, params, apply_residual=False))
    assert jnp.allclose(out_nr, ref - x, atol=1e-4, rtol=1e-4)

    print("KERNEL_OK")
</pallas_src>

<mosaic_0001>
module attributes {stable_mosaic.version = 11 : i64} {
  func.func @_dwconv_kernel(%arg0: i32, %arg1: i32, %arg2: memref<1x32x22xf32, #tpu.memory_space<vmem>>, %arg3: memref<32x7xf32, #tpu.memory_space<vmem>>, %arg4: memref<32x1xf32, #tpu.memory_space<vmem>>, %arg5: memref<1x32x16xf32, #tpu.memory_space<vmem>>) attributes {dimension_semantics = [#tpu.dimension_semantics<parallel>, #tpu.dimension_semantics<parallel>], iteration_bounds = array<i64: 2, 1>, scalar_prefetch = 0 : i64, scratch_operands = 0 : i64, tpu.core_type = #tpu.core_type<tc>, window_params = [{transform_indices = @transform_0, window_bounds = array<i64: 1, 32, 22>}, {transform_indices = @transform_1, window_bounds = array<i64: 32, 7>}, {transform_indices = @transform_2, window_bounds = array<i64: 32, 1>}, {transform_indices = @transform_3, window_bounds = array<i64: 1, 32, 16>}]} {
    %c0 = arith.constant 0 : index
    %c0_0 = arith.constant 0 : index
    %c0_1 = arith.constant 0 : index
    %0 = vector.load %arg2[%c0, %c0_0, %c0_1] : memref<1x32x22xf32, #tpu.memory_space<vmem>>, vector<1x32x22xf32>
    %1 = vector.shape_cast %0 : vector<1x32x22xf32> to vector<32x22xf32>
    %c0_2 = arith.constant 0 : index
    %c0_3 = arith.constant 0 : index
    %2 = vector.load %arg3[%c0_2, %c0_3] : memref<32x7xf32, #tpu.memory_space<vmem>>, vector<32x7xf32>
    %3 = vector.extract_strided_slice %2 {offsets = [0, 0], sizes = [32, 1], strides = [1, 1]} : vector<32x7xf32> to vector<32x1xf32>
    %4 = vector.extract_strided_slice %1 {offsets = [0, 0], sizes = [32, 16], strides = [1, 1]} : vector<32x22xf32> to vector<32x16xf32>
    %5 = vector.broadcast %3 : vector<32x1xf32> to vector<32x16xf32>
    %6 = arith.mulf %5, %4 : vector<32x16xf32>
    %7 = vector.extract_strided_slice %2 {offsets = [0, 1], sizes = [32, 1], strides = [1, 1]} : vector<32x7xf32> to vector<32x1xf32>
    %8 = vector.extract_strided_slice %1 {offsets = [0, 1], sizes = [32, 16], strides = [1, 1]} : vector<32x22xf32> to vector<32x16xf32>
    %9 = vector.broadcast %7 : vector<32x1xf32> to vector<32x16xf32>
    %10 = arith.mulf %9, %8 : vector<32x16xf32>
    %11 = arith.addf %6, %10 : vector<32x16xf32>
    %12 = vector.extract_strided_slice %2 {offsets = [0, 2], sizes = [32, 1], strides = [1, 1]} : vector<32x7xf32> to vector<32x1xf32>
    %13 = vector.extract_strided_slice %1 {offsets = [0, 2], sizes = [32, 16], strides = [1, 1]} : vector<32x22xf32> to vector<32x16xf32>
    %14 = vector.broadcast %12 : vector<32x1xf32> to vector<32x16xf32>
    %15 = arith.mulf %14, %13 : vector<32x16xf32>
    %16 = arith.addf %11, %15 : vector<32x16xf32>
    %17 = vector.extract_strided_slice %2 {offsets = [0, 3], sizes = [32, 1], strides = [1, 1]} : vector<32x7xf32> to vector<32x1xf32>
    %18 = vector.extract_strided_slice %1 {offsets = [0, 3], sizes = [32, 16], strides = [1, 1]} : vector<32x22xf32> to vector<32x16xf32>
    %19 = vector.broadcast %17 : vector<32x1xf32> to vector<32x16xf32>
    %20 = arith.mulf %19, %18 : vector<32x16xf32>
    %21 = arith.addf %16, %20 : vector<32x16xf32>
    %22 = vector.extract_strided_slice %2 {offsets = [0, 4], sizes = [32, 1], strides = [1, 1]} : vector<32x7xf32> to vector<32x1xf32>
    %23 = vector.extract_strided_slice %1 {offsets = [0, 4], sizes = [32, 16], strides = [1, 1]} : vector<32x22xf32> to vector<32x16xf32>
    %24 = vector.broadcast %22 : vector<32x1xf32> to vector<32x16xf32>
    %25 = arith.mulf %24, %23 : vector<32x16xf32>
    %26 = arith.addf %21, %25 : vector<32x16xf32>
    %27 = vector.extract_strided_slice %2 {offsets = [0, 5], sizes = [32, 1], strides = [1, 1]} : vector<32x7xf32> to vector<32x1xf32>
    %28 = vector.extract_strided_slice %1 {offsets = [0, 5], sizes = [32, 16], strides = [1, 1]} : vector<32x22xf32> to vector<32x16xf32>
    %29 = vector.broadcast %27 : vector<32x1xf32> to vector<32x16xf32>
    %30 = arith.mulf %29, %28 : vector<32x16xf32>
    %31 = arith.addf %26, %30 : vector<32x16xf32>
    %32 = vector.extract_strided_slice %2 {offsets = [0, 6], sizes = [32, 1], strides = [1, 1]} : vector<32x7xf32> to vector<32x1xf32>
    %33 = vector.extract_strided_slice %1 {offsets = [0, 6], sizes = [32, 16], strides = [1, 1]} : vector<32x22xf32> to vector<32x16xf32>
    %34 = vector.broadcast %32 : vector<32x1xf32> to vector<32x16xf32>
    %35 = arith.mulf %34, %33 : vector<32x16xf32>
    %36 = arith.addf %31, %35 : vector<32x16xf32>
    %c0_4 = arith.constant 0 : index
    %c0_5 = arith.constant 0 : index
    %37 = vector.load %arg4[%c0_4, %c0_5] : memref<32x1xf32, #tpu.memory_space<vmem>>, vector<32x1xf32>
    %38 = vector.broadcast %37 : vector<32x1xf32> to vector<32x16xf32>
    %39 = arith.addf %36, %38 : vector<32x16xf32>
    %c0_6 = arith.constant 0 : index
    %c0_7 = arith.constant 0 : index
    %c0_8 = arith.constant 0 : index
    %40 = vector.load %arg5[%c0_6, %c0_7, %c0_8] : memref<1x32x16xf32, #tpu.memory_space<vmem>>, vector<1x32x16xf32>
    %41 = vector.shape_cast %40 : vector<1x32x16xf32> to vector<32x16xf32>
    %42 = vector.shape_cast %39 : vector<32x16xf32> to vector<1x32x16xf32>
    tpu.vector_store %arg5[%c0_6, %c0_7, %c0_8], %42 {strides = array<i32>} : memref<1x32x16xf32, #tpu.memory_space<vmem>>, vector<1x32x16xf32>,
    return
  }
  func.func @transform_0(%arg0: i32, %arg1: i32) -> (i32, i32, i32) {
    %c0_i32 = arith.constant 0 : i32
    %c0_i32_0 = arith.constant 0 : i32
    return %arg0, %arg1, %c0_i32 : i32, i32, i32
  }
  func.func @transform_1(%arg0: i32, %arg1: i32) -> (i32, i32) {
    %c0_i32 = arith.constant 0 : i32
    %c0_i32_0 = arith.constant 0 : i32
    return %arg1, %c0_i32 : i32, i32
  }
  func.func @transform_2(%arg0: i32, %arg1: i32) -> (i32, i32) {
    %c0_i32 = arith.constant 0 : i32
    %c0_i32_0 = arith.constant 0 : i32
    return %arg1, %c0_i32 : i32, i32
  }
  func.func @transform_3(%arg0: i32, %arg1: i32) -> (i32, i32, i32) {
    %c0_i32 = arith.constant 0 : i32
    %c0_i32_0 = arith.constant 0 : i32
    return %arg0, %arg1, %c0_i32 : i32, i32, i32
  }
}

</mosaic_0001>

<llo_original>
// kernel: tpu_custom_call.1
$region0: #{tpu_custom_call.1}
  #allocation0 [shape = 'u32[]', space=smem, size = 0x4, offset = 0x4, fixed_abs, tag = 'smem constant byte address 0x4 - core index']
  #allocation1 [shape = 'u32[144,128]{1,0:T(1,128)}', space=vmem, size = 0x12000, scoped, tag = 'internal scratch']
  %s0 = inlined_call_operand.vmem [shape: f32[2,32,22], index: 0, kind: input, shape index: {}]
  %s1 = inlined_call_operand.vmem [shape: f32[32,7], index: 1, kind: input, shape index: {}]
  %s2 = inlined_call_operand.vmem [shape: f32[32,1], index: 2, kind: input, shape index: {}]
  %s3 = inlined_call_operand.vmem [shape: f32[2,32,16], index: 3, kind: output, shape index: {}]
  %s4 = sld [smem:[#allocation0]]
  $region45: #{tpu_custom_call.1} parent=0
    _
  %s6 = ssub.s32 1, %s4
  %s7 = scalar_select 0, %s6, %s4
  loop: start=0, step=1, limit=4
  $region2: #{tpu_custom_call.1} parent=0 // loop_pre_header
    _
  $region3: #{tpu_custom_call.1} parent=0 // loop_header
    %s9 = sphi 0, %s13
    %p10 = scmp.ge.s32.totalorder %s9, 4
    %s16 = sphi 0, %s28
    %s17 = sphi 0, %s24
    %s18 = sphi 0, %s16
    %s19 = sphi 0, %s17
    %s20 = sphi 0, %s18
    %s21 = sphi 0, %s19
    %s33 = sphi 0, %s35
    %s36 = sphi 0, %s33
    %s37 = sphi 0, %s36
    %s53 = sphi 0, %s37
    %s59 = sphi 0, %s61
    %s62 = sphi 0, %s59
    %s63 = sphi 0, %s62
    %s79 = sphi 0, %s63
    %s85 = sphi 0, %s87
    %s88 = sphi 0, %s85
    %s89 = sphi 0, %s88
    %s105 = sphi 0, %s89
    %s113 = sphi 0, %s115
    %s116 = sphi 0, %s113
    %s117 = sphi 0, %s116
    %s133 = sphi 0, %s117
  $region4: #{tpu_custom_call.1} parent=0 // loop_header_branch
    %12 = sbr.rel (%p10) target = $region8
  $region5: #{tpu_custom_call.1} parent=0 // loop_body
    %s14 = ssub.s32 %s9, 1
    %s15 = ssub.s32 %s9, 2
    %s22 = sadd.s32 1, %s17
    %p23 = scmp.ge.s32.totalorder %s22, 1
    %s24 = scalar_select %p23, 0, %s22
    %s25 = sadd.s32 1, %s16
    %s26 = scalar_select %p23, %s25, %s16
    %p27 = scmp.ge.s32.totalorder %s26, 2
    %s28 = scalar_select %p27, 0, %s26
    %s29 = ssub.s32 %s16, %s28
    %s30 = ssub.s32 %s17, %s24
    %s31 = sor.u32 %s29, %s30
    %p32 = scmp.eq.s32.totalorder %s31, 0
    %s34 = sadd.s32 %s33, 1
    %s35 = scalar_select %p32, %s33, %s34
    %p38 = pneg %p32
    %p39 = scmp.eq.s32.totalorder %s9, 1
    %p40 = por %p38, %p39
    %p41 = scmp.ne.s32.totalorder %s33, %s36
    %p42 = scmp.eq.s32.totalorder %s9, 0
    %p43 = por %p41, %p42
    %p44 = scmp.ne.s32.totalorder %s33, %s36
    %p45 = scmp.eq.s32.totalorder %s14, 1
    %p46 = por %p44, %p45
    %p47 = scmp.ne.s32.totalorder %s36, %s37
    %p48 = scmp.eq.s32.totalorder %s14, 0
    %p49 = por %p47, %p48
    %p50 = scmp.ne.s32.totalorder %s36, %s37
    %p51 = scmp.eq.s32.totalorder %s15, 1
    %p52 = por %p50, %p51
    %p54 = scmp.ne.s32.totalorder %s37, %s53
    %p55 = scmp.eq.s32.totalorder %s15, 0
    %p56 = por %p54, %p55
    %s57 = ssub.s32 %s17, %s24
    %p58 = scmp.eq.s32.totalorder %s57, 0
    %s60 = sadd.s32 %s59, 1
    %s61 = scalar_select %p58, %s59, %s60
    %p64 = pneg %p58
    %p65 = scmp.eq.s32.totalorder %s9, 1
    %p66 = por %p64, %p65
    %p67 = scmp.ne.s32.totalorder %s59, %s62
    %p68 = scmp.eq.s32.totalorder %s9, 0
    %p69 = por %p67, %p68
    %p70 = scmp.ne.s32.totalorder %s59, %s62
    %p71 = scmp.eq.s32.totalorder %s14, 1
    %p72 = por %p70, %p71
    %p73 = scmp.ne.s32.totalorder %s62, %s63
    %p74 = scmp.eq.s32.totalorder %s14, 0
    %p75 = por %p73, %p74
    %p76 = scmp.ne.s32.totalorder %s62, %s63
    %p77 = scmp.eq.s32.totalorder %s15, 1
    %p78 = por %p76, %p77
    %p80 = scmp.ne.s32.totalorder %s63, %s79
    %p81 = scmp.eq.s32.totalorder %s15, 0
    %p82 = por %p80, %p81
    %s83 = ssub.s32 %s17, %s24
    %p84 = scmp.eq.s32.totalorder %s83, 0
    %s86 = sadd.s32 %s85, 1
    %s87 = scalar_select %p84, %s85, %s86
    %p90 = pneg %p84
    %p91 = scmp.eq.s32.totalorder %s9, 1
    %p92 = por %p90, %p91
    %p93 = scmp.ne.s32.totalorder %s85, %s88
    %p94 = scmp.eq.s32.totalorder %s9, 0
    %p95 = por %p93, %p94
    %p96 = scmp.ne.s32.totalorder %s85, %s88
    %p97 = scmp.eq.s32.totalorder %s14, 1
    %p98 = por %p96, %p97
    %p99 = scmp.ne.s32.totalorder %s88, %s89
    %p100 = scmp.eq.s32.totalorder %s14, 0
    %p101 = por %p99, %p100
    %p102 = scmp.ne.s32.totalorder %s88, %s89
    %p103 = scmp.eq.s32.totalorder %s15, 1
    %p104 = por %p102, %p103
    %p106 = scmp.ne.s32.totalorder %s89, %s105
    %p107 = scmp.eq.s32.totalorder %s15, 0
    %p108 = por %p106, %p107
    %s109 = ssub.s32 %s16, %s28
    %s110 = ssub.s32 %s17, %s24
    %s111 = sor.u32 %s109, %s110
    %p112 = scmp.eq.s32.totalorder %s111, 0
    %s114 = sadd.s32 %s113, 1
    %s115 = scalar_select %p112, %s113, %s114
    %p118 = pneg %p112
    %p119 = scmp.eq.s32.totalorder %s9, 1
    %p120 = por %p118, %p119
    %p121 = scmp.ne.s32.totalorder %s113, %s116
    %p122 = scmp.eq.s32.totalorder %s9, 0
    %p123 = por %p121, %p122
    %p124 = scmp.ne.s32.totalorder %s113, %s116
    %p125 = scmp.eq.s32.totalorder %s14, 1
    %p126 = por %p124, %p125
    %p127 = scmp.ne.s32.totalorder %s116, %s117
    %p128 = scmp.eq.s32.totalorder %s14, 0
    %p129 = por %p127, %p128
    %p130 = scmp.ne.s32.totalorder %s116, %s117
    %p131 = scmp.eq.s32.totalorder %s15, 1
    %p132 = por %p130, %p131
    %p134 = scmp.ne.s32.totalorder %s117, %s133
    %p135 = scmp.eq.s32.totalorder %s15, 0
    %p136 = por %p134, %p135
    %p137 = scmp.le.s32.totalorder 1, %s9
    %p138 = scmp.lt.s32.totalorder %s9, 3
    %p139 = pnand %p137, %p138
    %p140 = pneg %p139
    // Predicated region
    $region9: #{tpu_custom_call.1} parent=5 // pred_check
      _
    $region10: #{tpu_custom_call.1} parent=5 // pred_check_branch
      %142 = sbr.rel (%p139) target = $region12
    $region11: #{tpu_custom_call.1} parent=5 // pred_region
      %s143 = ssub.s32 %s9, 1
      // Predicated region
      $region13: #{tpu_custom_call.1} parent=11 // pred_check
        %p144 = pneg %p75
      $region14: #{tpu_custom_call.1} parent=11 // pred_check_branch
        %146 = sbr.rel (%p144) target = $region16
      $region15: #{tpu_custom_call.1} parent=11 // pred_region
        %s147 = smul.u32 4, %s19
        %p148 = scmp.lt.s32.totalorder %s147, 3
        %s149 = scalar_select %p148, %s147, 3
        %s150 = smul.addr %s149, 8
        %s151 = scalar_lea.vmem %s1, %s150
        %s152 = smul.u32 4, %s19
      $region16: #{tpu_custom_call.1} parent=11 // pred_fallthru
        _
      // Predicated region
      $region17: #{tpu_custom_call.1} parent=11 // pred_check
        %p153 = pneg %p101
      $region18: #{tpu_custom_call.1} parent=11 // pred_check_branch
        %155 = sbr.rel (%p153) target = $region20
      $region19: #{tpu_custom_call.1} parent=11 // pred_region
        %s156 = smul.u32 4, %s19
        %p157 = scmp.lt.s32.totalorder %s156, 3
        %s158 = scalar_select %p157, %s156, 3
        %s159 = smul.addr %s158, 8
        %s160 = scalar_lea.vmem %s2, %s159
        %s161 = smul.u32 4, %s19
      $region20: #{tpu_custom_call.1} parent=11 // pred_fallthru
        _
    $region12: #{tpu_custom_call.1} parent=5 // pred_fallthru
      _
    %p162 = scmp.lt.s32.totalorder %s9, 2
    // Predicated region
    $region21: #{tpu_custom_call.1} parent=5 // pred_check
      %p163 = pneg %p162
    $region22: #{tpu_custom_call.1} parent=5 // pred_check_branch
      %165 = sbr.rel (%p163) target = $region24
    $region23: #{tpu_custom_call.1} parent=5 // pred_region
      // Predicated region
      $region25: #{tpu_custom_call.1} parent=23 // pred_check
        %p166 = pneg %p43
      $region26: #{tpu_custom_call.1} parent=23 // pred_check_branch
        %168 = sbr.rel (%p166) target = $region28
      $region27: #{tpu_custom_call.1} parent=23 // pred_region
        %s169 = smul.u32 4, %s17
        %p170 = scmp.lt.s32.totalorder %s16, 1
        %s171 = scalar_select %p170, %s16, 1
        %p172 = scmp.lt.s32.totalorder %s169, 3
        %s173 = scalar_select %p172, %s169, 3
        %s174 = smul.addr %s171, 4
        %s175 = sadd.s32 %s173, %s174
        %s176 = smul.addr %s175, 8
        %s177 = scalar_lea.vmem %s0, %s176
        %s178 = smul.u32 4, %s17
      $region28: #{tpu_custom_call.1} parent=23 // pred_fallthru
        _
    $region24: #{tpu_custom_call.1} parent=5 // pred_fallthru
      _
    %p179 = scmp.le.s32.totalorder 1, %s9
    %p180 = scmp.lt.s32.totalorder %s9, 3
    %p181 = pnand %p179, %p180
    %p182 = pneg %p181
    // Predicated region
    $region29: #{tpu_custom_call.1} parent=5 // pred_check
      _
    $region30: #{tpu_custom_call.1} parent=5 // pred_check_branch
      %184 = sbr.rel (%p181) target = $region32
    $region31: #{tpu_custom_call.1} parent=5 // pred_region
      %s185 = ssub.s32 %s9, 1
      %s186 = smul.u32 4, %s19
      %p187 = scmp.lt.s32.totalorder %s18, 1
      %s188 = scalar_select %p187, %s18, 1
      %p189 = scmp.lt.s32.totalorder %s186, 3
      %s190 = scalar_select %p189, %s186, 3
      %s191 = smul.addr %s188, 4
      %s192 = sadd.s32 %s190, %s191
      %s193 = smul.addr %s192, 8
      %s194 = scalar_lea.vmem %s0, %s193
      %p195 = pneg %p49
      %p196 = pneg %p46
      %s197 = smul.u32 4, %s19
      %p198 = scmp.lt.s32.totalorder %s197, 3
      %s199 = scalar_select %p198, %s197, 3
      %s200 = smul.addr %s199, 8
      %s201 = scalar_lea.vmem %s1, %s200
      %p202 = pneg %p75
      %p203 = pneg %p72
      %s204 = smul.u32 4, %s19
      %p205 = scmp.lt.s32.totalorder %s204, 3
      %s206 = scalar_select %p205, %s204, 3
      %s207 = smul.addr %s206, 8
      %s208 = scalar_lea.vmem %s2, %s207
      %p209 = pneg %p101
      %p210 = pneg %p98
      %p211 = pneg %p129
      %p212 = pneg %p126
      %s213 = smul.u32 4, %s19
      %p214 = scmp.lt.s32.totalorder %s18, 1
      %s215 = scalar_select %p214, %s18, 1
      %p216 = scmp.lt.s32.totalorder %s213, 3
      %s217 = scalar_select %p216, %s213, 3
      %s218 = smul.addr %s215, 4
      %s219 = sadd.s32 %s217, %s218
      %s220 = smul.addr %s219, 8
      %s221 = scalar_lea.vmem %s3, %s220
      %s222 = smul.u32 4, %s19
      %p223 = scmp.lt.s32.totalorder %s18, 1
      %s224 = scalar_select %p223, %s18, 1
      %p225 = scmp.lt.s32.totalorder %s222, 3
      %s226 = scalar_select %p225, %s222, 3
      %s227 = smul.addr %s224, 4
      %s228 = sadd.s32 %s226, %s227
      %s229 = smul.addr %s228, 8
      %s230 = scalar_lea.vmem %s0, %s229
      %s231 = smul.u32 4, %s19
      %s232 = smul.u32 4, %s19
      %p233 = scmp.lt.s32.totalorder %s232, 3
      %s234 = scalar_select %p233, %s232, 3
      %s235 = smul.addr %s234, 8
      %s236 = scalar_lea.vmem %s1, %s235
      %s237 = smul.u32 4, %s19
      %s238 = smul.u32 4, %s19
      %p239 = scmp.lt.s32.totalorder %s238, 3
      %s240 = scalar_select %p239, %s238, 3
      %s241 = smul.addr %s240, 8
      %s242 = scalar_lea.vmem %s2, %s241
      %s243 = smul.u32 4, %s19
      %s244 = smul.u32 4, %s19
      %p245 = scmp.lt.s32.totalorder %s18, 1
      %s246 = scalar_select %p245, %s18, 1
      %p247 = scmp.lt.s32.totalorder %s244, 3
      %s248 = scalar_select %p247, %s244, 3
      %s249 = smul.addr %s246, 4
      %s250 = sadd.s32 %s248, %s249
      %s251 = smul.addr %s250, 8
      %s252 = scalar_lea.vmem %s3, %s251
      %s253 = smul.u32 4, %s19
      %v254 = vld [vmem:[%s230] sm:$0xff]
      %v255 = vld [vmem:[%s230 + $0x8] sm:$0xff]
      %v256 = vld [vmem:[%s230 + $0x10] sm:$0xff]
      %v257 = vld [vmem:[%s230 + $0x18] sm:$0xff]
      %v258 = vld [vmem:[%s236] sm:$0xff]
      %v259 = vld [vmem:[%s236 + $0x8] sm:$0xff]
      %v260 = vld [vmem:[%s236 + $0x10] sm:$0xff]
      %v261 = vld [vmem:[%s236 + $0x18] sm:$0xff]
      %263 = vset.pattern.permute.xlu0 0
      %264 = vperm.xlu0 %263, %v258
      %v265 = vpop.permute.xlu0 %264
      %268 = vset.pattern.permute.xlu0 0
      %269 = vperm.xlu0 %268, %v259
      %v270 = vpop.permute.xlu0 %269
      %273 = vset.pattern.permute.xlu0 0
      %274 = vperm.xlu0 %273, %v260
      %v275 = vpop.permute.xlu0 %274
      %278 = vset.pattern.permute.xlu0 0
      %279 = vperm.xlu0 %278, %v261
      %v280 = vpop.permute.xlu0 %279
      %v282 = vmul.f32 %v265, %v254
      %v283 = vmul.f32 %v270, %v255
      %v284 = vmul.f32 %v275, %v256
      %v285 = vmul.f32 %v280, %v257
      %286 = vset.pattern.permute.xlu0 1
      %287 = vperm.xlu0 %286, %v258
      %v288 = vpop.permute.xlu0 %287
      %290 = vset.pattern.permute.xlu0 1
      %291 = vperm.xlu0 %290, %v259
      %v292 = vpop.permute.xlu0 %291
      %294 = vset.pattern.permute.xlu0 1
      %295 = vperm.xlu0 %294, %v260
      %v296 = vpop.permute.xlu0 %295
      %298 = vset.pattern.permute.xlu0 1
      %299 = vperm.xlu0 %298, %v261
      %v300 = vpop.permute.xlu0 %299
      %v302 = vmul.f32 %v288, %v254
      %v303 = vmul.f32 %v292, %v255
      %v304 = vmul.f32 %v296, %v256
      %v305 = vmul.f32 %v300, %v257
      %310 = vrot.lane.b32.xlu0 %v302, 127
      %v311 = vpop.permute.xlu0 %310
      %312 = vrot.lane.b32.xlu0 %v303, 127
      %v313 = vpop.permute.xlu0 %312
      %314 = vrot.lane.b32.xlu0 %v304, 127
      %v315 = vpop.permute.xlu0 %314
      %316 = vrot.lane.b32.xlu0 %v305, 127
      %v317 = vpop.permute.xlu0 %316
      %v322 = vadd.f32 %v282, %v311
      %v323 = vadd.f32 %v283, %v313
      %v324 = vadd.f32 %v284, %v315
      %v325 = vadd.f32 %v285, %v317
      %326 = vset.pattern.permute.xlu0 2
      %327 = vperm.xlu0 %326, %v258
      %v328 = vpop.permute.xlu0 %327
      %330 = vset.pattern.permute.xlu0 2
      %331 = vperm.xlu0 %330, %v259
      %v332 = vpop.permute.xlu0 %331
      %334 = vset.pattern.permute.xlu0 2
      %335 = vperm.xlu0 %334, %v260
      %v336 = vpop.permute.xlu0 %335
      %338 = vset.pattern.permute.xlu0 2
      %339 = vperm.xlu0 %338, %v261
      %v340 = vpop.permute.xlu0 %339
      %v342 = vmul.f32 %v328, %v254
      %v343 = vmul.f32 %v332, %v255
      %v344 = vmul.f32 %v336, %v256
      %v345 = vmul.f32 %v340, %v257
      %350 = vrot.lane.b32.xlu0 %v342, 126
      %v351 = vpop.permute.xlu0 %350
      %352 = vrot.lane.b32.xlu0 %v343, 126
      %v353 = vpop.permute.xlu0 %352
      %354 = vrot.lane.b32.xlu0 %v344, 126
      %v355 = vpop.permute.xlu0 %354
      %356 = vrot.lane.b32.xlu0 %v345, 126
      %v357 = vpop.permute.xlu0 %356
      %v362 = vadd.f32 %v322, %v351
      %v363 = vadd.f32 %v323, %v353
      %v364 = vadd.f32 %v324, %v355
      %v365 = vadd.f32 %v325, %v357
      %366 = vset.pattern.permute.xlu0 3
      %367 = vperm.xlu0 %366, %v258
      %v368 = vpop.permute.xlu0 %367
      %370 = vset.pattern.permute.xlu0 3
      %371 = vperm.xlu0 %370, %v259
      %v372 = vpop.permute.xlu0 %371
      %374 = vset.pattern.permute.xlu0 3
      %375 = vperm.xlu0 %374, %v260
      %v376 = vpop.permute.xlu0 %375
      %378 = vset.pattern.permute.xlu0 3
      %379 = vperm.xlu0 %378, %v261
      %v380 = vpop.permute.xlu0 %379
      %v382 = vmul.f32 %v368, %v254
      %v383 = vmul.f32 %v372, %v255
      %v384 = vmul.f32 %v376, %v256
      %v385 = vmul.f32 %v380, %v257
      %390 = vrot.lane.b32.xlu0 %v382, 125
      %v391 = vpop.permute.xlu0 %390
      %392 = vrot.lane.b32.xlu0 %v383, 125
      %v393 = vpop.permute.xlu0 %392
      %394 = vrot.lane.b32.xlu0 %v384, 125
      %v395 = vpop.permute.xlu0 %394
      %396 = vrot.lane.b32.xlu0 %v385, 125
      %v397 = vpop.permute.xlu0 %396
      %v402 = vadd.f32 %v362, %v391
      %v403 = vadd.f32 %v363, %v393
      %v404 = vadd.f32 %v364, %v395
      %v405 = vadd.f32 %v365, %v397
      %406 = vset.pattern.permute.xlu0 4
      %407 = vperm.xlu0 %406, %v258
      %v408 = vpop.permute.xlu0 %407
      %410 = vset.pattern.permute.xlu0 4
      %411 = vperm.xlu0 %410, %v259
      %v412 = vpop.permute.xlu0 %411
      %414 = vset.pattern.permute.xlu0 4
      %415 = vperm.xlu0 %414, %v260
      %v416 = vpop.permute.xlu0 %415
      %418 = vset.pattern.permute.xlu0 4
      %419 = vperm.xlu0 %418, %v261
      %v420 = vpop.permute.xlu0 %419
      %v422 = vmul.f32 %v408, %v254
      %v423 = vmul.f32 %v412, %v255
      %v424 = vmul.f32 %v416, %v256
      %v425 = vmul.f32 %v420, %v257
      %430 = vrot.lane.b32.xlu0 %v422, 124
      %v431 = vpop.permute.xlu0 %430
      %432 = vrot.lane.b32.xlu0 %v423, 124
      %v433 = vpop.permute.xlu0 %432
      %434 = vrot.lane.b32.xlu0 %v424, 124
      %v435 = vpop.permute.xlu0 %434
      %436 = vrot.lane.b32.xlu0 %v425, 124
      %v437 = vpop.permute.xlu0 %436
      %v442 = vadd.f32 %v402, %v431
      %v443 = vadd.f32 %v403, %v433
      %v444 = vadd.f32 %v404, %v435
      %v445 = vadd.f32 %v405, %v437
      %446 = vset.pattern.permute.xlu0 5
      %447 = vperm.xlu0 %446, %v258
      %v448 = vpop.permute.xlu0 %447
      %450 = vset.pattern.permute.xlu0 5
      %451 = vperm.xlu0 %450, %v259
      %v452 = vpop.permute.xlu0 %451
      %454 = vset.pattern.permute.xlu0 5
      %455 = vperm.xlu0 %454, %v260
      %v456 = vpop.permute.xlu0 %455
      %458 = vset.pattern.permute.xlu0 5
      %459 = vperm.xlu0 %458, %v261
      %v460 = vpop.permute.xlu0 %459
      %v462 = vmul.f32 %v448, %v254
      %v463 = vmul.f32 %v452, %v255
      %v464 = vmul.f32 %v456, %v256
      %v465 = vmul.f32 %v460, %v257
      %470 = vrot.lane.b32.xlu0 %v462, 123
      %v471 = vpop.permute.xlu0 %470
      %472 = vrot.lane.b32.xlu0 %v463, 123
      %v473 = vpop.permute.xlu0 %472
      %474 = vrot.lane.b32.xlu0 %v464, 123
      %v475 = vpop.permute.xlu0 %474
      %476 = vrot.lane.b32.xlu0 %v465, 123
      %v477 = vpop.permute.xlu0 %476
      %v482 = vadd.f32 %v442, %v471
      %v483 = vadd.f32 %v443, %v473
      %v484 = vadd.f32 %v444, %v475
      %v485 = vadd.f32 %v445, %v477
      %486 = vset.pattern.permute.xlu0 6
      %487 = vperm.xlu0 %486, %v258
      %v488 = vpop.permute.xlu0 %487
      %490 = vset.pattern.permute.xlu0 6
      %491 = vperm.xlu0 %490, %v259
      %v492 = vpop.permute.xlu0 %491
      %494 = vset.pattern.permute.xlu0 6
      %495 = vperm.xlu0 %494, %v260
      %v496 = vpop.permute.xlu0 %495
      %498 = vset.pattern.permute.xlu0 6
      %499 = vperm.xlu0 %498, %v261
      %v500 = vpop.permute.xlu0 %499
      %v502 = vmul.f32 %v488, %v254
      %v503 = vmul.f32 %v492, %v255
      %v504 = vmul.f32 %v496, %v256
      %v505 = vmul.f32 %v500, %v257
      %510 = vrot.lane.b32.xlu0 %v502, 122
      %v511 = vpop.permute.xlu0 %510
      %512 = vrot.lane.b32.xlu0 %v503, 122
      %v513 = vpop.permute.xlu0 %512
      %514 = vrot.lane.b32.xlu0 %v504, 122
      %v515 = vpop.permute.xlu0 %514
      %516 = vrot.lane.b32.xlu0 %v505, 122
      %v517 = vpop.permute.xlu0 %516
      %v522 = vadd.f32 %v482, %v511
      %v523 = vadd.f32 %v483, %v513
      %v524 = vadd.f32 %v484, %v515
      %v525 = vadd.f32 %v485, %v517
      %v526 = vld [vmem:[%s242] sm:$0xff]
      %v527 = vld [vmem:[%s242 + $0x8] sm:$0xff]
      %v528 = vld [vmem:[%s242 + $0x10] sm:$0xff]
      %v529 = vld [vmem:[%s242 + $0x18] sm:$0xff]
      %531 = vset.pattern.permute.xlu0 0
      %532 = vperm.xlu0 %531, %v526
      %v533 = vpop.permute.xlu0 %532
      %536 = vset.pattern.permute.xlu0 0
      %537 = vperm.xlu0 %536, %v527
      %v538 = vpop.permute.xlu0 %537
      %541 = vset.pattern.permute.xlu0 0
      %542 = vperm.xlu0 %541, %v528
      %v543 = vpop.permute.xlu0 %542
      %546 = vset.pattern.permute.xlu0 0
      %547 = vperm.xlu0 %546, %v529
      %v548 = vpop.permute.xlu0 %547
      %v550 = vadd.f32 %v522, %v533
      %v551 = vadd.f32 %v523, %v538
      %v552 = vadd.f32 %v524, %v543
      %v553 = vadd.f32 %v525, %v548
      %vm554 = vcmask 130048
      %555 = vst.msk [vmem:[%s252] sm:$0xff] %vm554, %v550
      %556 = vst.msk [vmem:[%s252 + $0x8] sm:$0xff] %vm554, %v551
      %557 = vst.msk [vmem:[%s252 + $0x10] sm:$0xff] %vm554, %v552
      %558 = vst.msk [vmem:[%s252 + $0x18] sm:$0xff] %vm554, %v553
      %s559 = smul.u32 4, %s19
      %p560 = scmp.lt.s32.totalorder %s18, 1
      %s561 = scalar_select %p560, %s18, 1
      %p562 = scmp.lt.s32.totalorder %s559, 3
      %s563 = scalar_select %p562, %s559, 3
      %s564 = smul.addr %s561, 4
      %s565 = sadd.s32 %s563, %s564
      %s566 = smul.addr %s565, 8
      %s567 = scalar_lea.vmem %s3, %s566
      // Predicated region
      $region33: #{tpu_custom_call.1} parent=31 // pred_check
        %p568 = pneg %p126
      $region34: #{tpu_custom_call.1} parent=31 // pred_check_branch
        %570 = sbr.rel (%p568) target = $region36
      $region35: #{tpu_custom_call.1} parent=31 // pred_region
        %s571 = smul.u32 4, %s19
      $region36: #{tpu_custom_call.1} parent=31 // pred_fallthru
        _
    $region32: #{tpu_custom_call.1} parent=5 // pred_fallthru
      _
    %p572 = scmp.le.s32.totalorder 2, %s9
    // Predicated region
    $region37: #{tpu_custom_call.1} parent=5 // pred_check
      %p573 = pneg %p572
    $region38: #{tpu_custom_call.1} parent=5 // pred_check_branch
      %575 = sbr.rel (%p573) target = $region40
    $region39: #{tpu_custom_call.1} parent=5 // pred_region
      %s576 = ssub.s32 %s9, 2
      // Predicated region
      $region41: #{tpu_custom_call.1} parent=39 // pred_check
        %p577 = pneg %p132
      $region42: #{tpu_custom_call.1} parent=39 // pred_check_branch
        %579 = sbr.rel (%p577) target = $region44
      $region43: #{tpu_custom_call.1} parent=39 // pred_region
        %s580 = smul.u32 4, %s21
        %p581 = scmp.lt.s32.totalorder %s20, 1
        %s582 = scalar_select %p581, %s20, 1
        %p583 = scmp.lt.s32.totalorder %s580, 3
        %s584 = scalar_select %p583, %s580, 3
        %s585 = smul.addr %s582, 4
        %s586 = sadd.s32 %s584, %s585
        %s587 = smul.addr %s586, 8
        %s588 = scalar_lea.vmem %s3, %s587
      $region44: #{tpu_custom_call.1} parent=39 // pred_fallthru
        _
    $region40: #{tpu_custom_call.1} parent=5 // pred_fallthru
      _
  $region6: #{tpu_custom_call.1} parent=0 // loop_footer
    %s13 = sadd.s32 1, %s9
  $region7: #{tpu_custom_call.1} parent=0 // loop_footer_branch
    %8 = sbr.rel target = $region3
  $region8: #{tpu_custom_call.1} parent=0 // loop_exit
    _

</llo_original>
